<compile_context>
chip_gen: v7x
topology: tpu7x:2x2x1
jax: 0.10.0
libtpu: 0.0.40
codegen_flags: <defaults>
</compile_context>

<pallas_src>
import functools

import jax
import jax.numpy as jnp
from jax.experimental import pallas as pl
from jax.experimental.pallas import tpu as pltpu


def _round_up(x: int, m: int) -> int:
    return ((x + m - 1) // m) * m


def bow_mlp_kernel(x_ref, w1_ref, b1_ref, w2_ref, b2_ref, out_ref, acc_ref,
                   *, tk, w1_resident):
    """Grid = (batch_tiles, k_tiles); k (vocab) is the reduction axis (last)."""
    k = pl.program_id(1)

    @pl.when(k == 0)
    def _():
        acc_ref[...] = jnp.zeros_like(acc_ref)

    if w1_resident:
        # Full w1 lives in VMEM (constant index_map => DMA'd once); slice the
        # current K tile out of it.  tk is a static multiple of 128.
        start = pl.multiple_of(k * tk, 128)
        w1_blk = w1_ref[pl.ds(start, tk), :]
    else:
        w1_blk = w1_ref[...]

    # x stays f32 (exact BoW counts); bf16 w1 is upcast in vregs.  f32 MXU
    # accumulation; this kernel is HBM-bound so the extra MXU passes are free.
    acc_ref[...] += jnp.dot(
        x_ref[...], w1_blk.astype(jnp.float32),
        preferred_element_type=jnp.float32)

    @pl.when(k == pl.num_programs(1) - 1)
    def _():
        # Epilogue in f32: bias + ReLU, tiny second matmul, bias + sigmoid.
        h = jnp.maximum(acc_ref[...] + b1_ref[...], 0.0)               # (tb, H)
        z = jnp.dot(h, w2_ref[...], preferred_element_type=jnp.float32)
        z = z + b2_ref[...]                                            # (tb, OP)
        out_ref[...] = jax.nn.sigmoid(z).astype(out_ref.dtype)


def prepare_params(w1, b1, w2, b2, *, vocab_tile=None):
    """One-time pad/cast of the weights (hoisted out of the hot forward path).

    Weights use [in, out] layout (transposed vs. torch), so the kernel computes
    x @ W + b, matching torch's x @ W.T + b.
      w1: (V, H), b1: (H,) or (1, H), w2: (H, O), b2: (O,) or (1, O)
    Returns (padded params tuple, static meta dict for the forward call).
    """
    V, H = w1.shape
    O = w2.shape[1]
    tk = vocab_tile if vocab_tile is not None else min(2048, _round_up(V, 128))
    assert tk % 128 == 0, "vocab tile must be a multiple of 128"
    VP = _round_up(V, tk)
    OP = _round_up(O, 128)   # lane-dense output / w2 / b2 only (tiny arrays)

    # Dominant stream: bf16, hidden dim left UNPADDED.
    w1_p = jnp.zeros((VP, H), jnp.bfloat16).at[:V, :].set(w1.astype(jnp.bfloat16))
    # Elementwise path + tiny second matmul stay f32 (native on v5e).
    b1_p = jnp.asarray(b1, jnp.float32).reshape(1, H)
    w2_p = jnp.zeros((H, OP), jnp.float32).at[:, :O].set(w2.astype(jnp.float32))
    b2_p = jnp.zeros((1, OP), jnp.float32).at[:, :O].set(b2.astype(jnp.float32))
    return (w1_p, b1_p, w2_p, b2_p), {"tk": tk, "n_out": O}


@functools.partial(jax.jit,
                   static_argnames=("tk", "n_out", "tb", "w1_resident"))
def bow_classifier_forward(bow_vec, w1_p, b1_p, w2_p, b2_p, *,
                           tk, n_out, tb=None, w1_resident=None):
    """bow_vec: (B, V) f32. Padded params from prepare_params(). Returns (B, O)."""
    B, V = bow_vec.shape
    VP, H = w1_p.shape
    OP = w2_p.shape[1]
    assert VP % tk == 0

    # Minimal legal batch tile: multiple of 16 (covers f32/bf16 sublane tiling),
    # capped at 256 so big batches still get MXU-sized tiles.
    if tb is None:
        tb = min(256, _round_up(B, 16))
    BP = _round_up(B, tb)

    # Keep w1 fully VMEM-resident when it is small (<= 4 MiB bf16, unpadded H):
    # with default double-buffering that is <= 8 MiB, safe on v5e/v6e/v7x
    # scoped-VMEM defaults, and it avoids re-streaming w1 once per batch tile.
    if w1_resident is None:
        w1_resident = (VP * H * 2) <= (4 << 20)

    # Per-call activation padding only (weights were padded once, offline).
    x_p = jnp.zeros((BP, VP), jnp.float32).at[:B, :V].set(
        bow_vec.astype(jnp.float32))

    batch_tiles = BP // tb
    k_tiles = VP // tk
    grid = (batch_tiles, k_tiles)

    if w1_resident:
        w1_spec = pl.BlockSpec((VP, H), lambda b, k: (0, 0))   # resident
    else:
        w1_spec = pl.BlockSpec((tk, H), lambda b, k: (k, 0))   # streamed per K tile

    kernel = functools.partial(bow_mlp_kernel, tk=tk, w1_resident=w1_resident)

    w1_bytes = w1_p.size * 2 * (1 if w1_resident else batch_tiles)
    cost = pl.CostEstimate(
        flops=2 * BP * VP * H + 2 * BP * H * OP,
        transcendentals=BP * OP,                      # sigmoid
        bytes_accessed=(x_p.size * 4 + w1_bytes + b1_p.size * 4
                        + w2_p.size * 4 + b2_p.size * 4 + BP * OP * 4),
    )

    out_p = pl.pallas_call(
        kernel,
        out_shape=jax.ShapeDtypeStruct((BP, OP), jnp.float32),
        grid_spec=pltpu.PrefetchScalarGridSpec(
            num_scalar_prefetch=0,
            grid=grid,
            in_specs=[
                pl.BlockSpec((tb, tk), lambda b, k: (b, k)),   # x tile (f32)
                w1_spec,                                       # w1 (bf16, H unpadded)
                pl.BlockSpec((1, H), lambda b, k: (0, 0)),     # b1 (full, f32)
                pl.BlockSpec((H, OP), lambda b, k: (0, 0)),    # w2 (full, f32)
                pl.BlockSpec((1, OP), lambda b, k: (0, 0)),    # b2 (full, f32)
            ],
            # Output block index independent of k -> resident across the
            # reduction; written once in the epilogue (lane-dense, OP=128).
            out_specs=pl.BlockSpec((tb, OP), lambda b, k: (b, 0)),
            scratch_shapes=[pltpu.VMEM((tb, H), jnp.float32)],
        ),
        compiler_params=pltpu.CompilerParams(
            dimension_semantics=("parallel", "arbitrary"),
        ),
        cost_estimate=cost,
    )(x_p, w1_p, b1_p, w2_p, b2_p)

    # Drop batch padding and the padded output lanes (which hold sigmoid(0)).
    return out_p[:B, :n_out]


def init_params(key, vocab_size, hidden, output):
    """Deterministic init mimicking torch.nn.Linear (uniform +/- 1/sqrt(fan_in))."""
    k1, k2, k3, k4 = jax.random.split(key, 4)
    bound1 = 1.0 / jnp.sqrt(vocab_size)
    bound2 = 1.0 / jnp.sqrt(hidden)
    w1 = jax.random.uniform(k1, (vocab_size, hidden), jnp.float32, -bound1, bound1)
    b1 = jax.random.uniform(k2, (1, hidden), jnp.float32, -bound1, bound1)
    w2 = jax.random.uniform(k3, (hidden, output), jnp.float32, -bound2, bound2)
    b2 = jax.random.uniform(k4, (1, output), jnp.float32, -bound2, bound2)
    return w1, b1, w2, b2


if __name__ == "__main__":
    # Small shapes consistent with the module; vocab=384 with vocab_tile=128
    # exercises the K-tiled accumulator path (3 reduction steps).
    batch, vocab_size, hidden, output = 8, 384, 32, 8

    key = jax.random.PRNGKey(0)
    k_x, k_p = jax.random.split(key)
    # Bag-of-words style non-negative counts.
    bow_vec = jax.random.randint(k_x, (batch, vocab_size), 0, 4).astype(jnp.float32)
    w1, b1, w2, b2 = init_params(k_p, vocab_size, hidden, output)

    # One-time weight preparation (hoisted out of the per-call forward).
    params, meta = prepare_params(w1, b1, w2, b2, vocab_tile=128)

    # Exercise both w1 paths (VMEM-resident and per-tile streamed) + auto config.
    out_res = bow_classifier_forward(bow_vec, *params, **meta, tb=16,
                                     w1_resident=True)
    out_str = bow_classifier_forward(bow_vec, *params, **meta, tb=16,
                                     w1_resident=False)
    out_auto = bow_classifier_forward(bow_vec, *params, **meta)
    jax.block_until_ready((out_res, out_str, out_auto))
    assert out_res.shape == (batch, output)

    # Reference matched to the kernel's numerics: only w1 is quantized to bf16,
    # x / biases / w2 and all arithmetic in f32.
    w1_q = w1.astype(jnp.bfloat16).astype(jnp.float32)
    ref = jax.nn.sigmoid(jnp.maximum(bow_vec @ w1_q + b1, 0.0) @ w2 + b2)
    for out in (out_res, out_str, out_auto):
        assert jnp.allclose(out, ref, atol=2e-3, rtol=2e-3), \
            float(jnp.max(jnp.abs(out - ref)))

    # Looser sanity check against the pure-f32 reference (bf16 weight quant).
    ref_f32 = jax.nn.sigmoid(jnp.maximum(bow_vec @ w1 + b1, 0.0) @ w2 + b2)
    assert jnp.allclose(out_res, ref_f32, atol=2e-2, rtol=2e-2)

    print("KERNEL_OK")
</pallas_src>

<mosaic_0001>
module attributes {stable_mosaic.version = 11 : i64} {
  func.func @bow_mlp_kernel(%arg0: i32, %arg1: i32, %arg2: memref<16x128xf32, #tpu.memory_space<vmem>>, %arg3: memref<384x32xbf16, #tpu.memory_space<vmem>>, %arg4: memref<1x32xf32, #tpu.memory_space<vmem>>, %arg5: memref<32x128xf32, #tpu.memory_space<vmem>>, %arg6: memref<1x128xf32, #tpu.memory_space<vmem>>, %arg7: memref<16x128xf32, #tpu.memory_space<vmem>>, %arg8: memref<16x32xf32, #tpu.memory_space<vmem>>) attributes {dimension_semantics = [#tpu.dimension_semantics<parallel>, #tpu.dimension_semantics<arbitrary>], iteration_bounds = array<i64: 1, 3>, scalar_prefetch = 0 : i64, scratch_operands = 1 : i64, tpu.core_type = #tpu.core_type<tc>, window_params = [{transform_indices = @transform_0, window_bounds = array<i64: 16, 128>}, {pipeline_mode = #tpu.pipeline_mode<synchronous>, transform_indices = @transform_1, window_bounds = array<i64: 384, 32>}, {pipeline_mode = #tpu.pipeline_mode<synchronous>, transform_indices = @transform_2, window_bounds = array<i64: 1, 32>}, {pipeline_mode = #tpu.pipeline_mode<synchronous>, transform_indices = @transform_3, window_bounds = array<i64: 32, 128>}, {pipeline_mode = #tpu.pipeline_mode<synchronous>, transform_indices = @transform_4, window_bounds = array<i64: 1, 128>}, {transform_indices = @transform_5, window_bounds = array<i64: 16, 128>}]} {
    %c0_i32 = arith.constant 0 : i32
    %0 = arith.cmpi eq, %arg1, %c0_i32 : i32
    %1 = arith.extui %0 : i1 to i32
    %c0_i32_0 = arith.constant 0 : i32
    %2 = arith.cmpi ne, %1, %c0_i32_0 : i32
    scf.if %2 {
      %cst_8 = arith.constant 0.000000e+00 : f32
      %16 = vector.broadcast %cst_8 : f32 to vector<16x32xf32>
      %c0_9 = arith.constant 0 : index
      %c0_10 = arith.constant 0 : index
      %17 = vector.load %arg8[%c0_9, %c0_10] : memref<16x32xf32, #tpu.memory_space<vmem>>, vector<16x32xf32>
      tpu.vector_store %arg8[%c0_9, %c0_10], %16 {strides = array<i32>} : memref<16x32xf32, #tpu.memory_space<vmem>>, vector<16x32xf32>,
    } else {
    }
    %c128_i32 = arith.constant 128 : i32
    %3 = arith.muli %arg1, %c128_i32 : i32
    %4 = tpu.assume_multiple %3, 128 : i32
    %5 = arith.index_cast %4 : i32 to index
    %c0 = arith.constant 0 : index
    %6 = vector.load %arg3[%5, %c0] : memref<384x32xbf16, #tpu.memory_space<vmem>>, vector<128x32xbf16>
    %c0_1 = arith.constant 0 : index
    %c0_2 = arith.constant 0 : index
    %7 = vector.load %arg8[%c0_1, %c0_2] : memref<16x32xf32, #tpu.memory_space<vmem>>, vector<16x32xf32>
    %c0_3 = arith.constant 0 : index
    %c0_4 = arith.constant 0 : index
    %8 = vector.load %arg2[%c0_3, %c0_4] : memref<16x128xf32, #tpu.memory_space<vmem>>, vector<16x128xf32>
    %9 = arith.extf %6 : vector<128x32xbf16> to vector<128x32xf32>
    %cst = arith.constant dense<0.000000e+00> : vector<16x32xf32>
    %10 = tpu.matmul %8, %9, %cst {dimension_numbers = #tpu.dot_dimension_numbers<[1], [0], [0], [1], [0, 0, 1, 1], [], []>} : vector<16x128xf32>, vector<128x32xf32>, vector<16x32xf32> -> vector<16x32xf32>
    %11 = arith.addf %7, %10 : vector<16x32xf32>
    %c0_5 = arith.constant 0 : index
    %c0_6 = arith.constant 0 : index
    %12 = vector.load %arg8[%c0_5, %c0_6] : memref<16x32xf32, #tpu.memory_space<vmem>>, vector<16x32xf32>
    tpu.vector_store %arg8[%c0_5, %c0_6], %11 {strides = array<i32>} : memref<16x32xf32, #tpu.memory_space<vmem>>, vector<16x32xf32>,
    %c2_i32 = arith.constant 2 : i32
    %13 = arith.cmpi eq, %arg1, %c2_i32 : i32
    %14 = arith.extui %13 : i1 to i32
    %c0_i32_7 = arith.constant 0 : i32
    %15 = arith.cmpi ne, %14, %c0_i32_7 : i32
    scf.if %15 {
      %c0_8 = arith.constant 0 : index
      %c0_9 = arith.constant 0 : index
      %16 = vector.load %arg8[%c0_8, %c0_9] : memref<16x32xf32, #tpu.memory_space<vmem>>, vector<16x32xf32>
      %c0_10 = arith.constant 0 : index
      %c0_11 = arith.constant 0 : index
      %17 = vector.load %arg4[%c0_10, %c0_11] : memref<1x32xf32, #tpu.memory_space<vmem>>, vector<1x32xf32>
      %18 = vector.broadcast %17 : vector<1x32xf32> to vector<16x32xf32>
      %19 = arith.addf %16, %18 : vector<16x32xf32>
      %cst_12 = arith.constant 0.000000e+00 : f32
      %20 = vector.broadcast %cst_12 : f32 to vector<16x32xf32>
      %21 = arith.maximumf %19, %20 : vector<16x32xf32>
      %c0_13 = arith.constant 0 : index
      %c0_14 = arith.constant 0 : index
      %22 = vector.load %arg5[%c0_13, %c0_14] : memref<32x128xf32, #tpu.memory_space<vmem>>, vector<32x128xf32>
      %cst_15 = arith.constant dense<0.000000e+00> : vector<16x128xf32>
      %23 = tpu.matmul %21, %22, %cst_15 {dimension_numbers = #tpu.dot_dimension_numbers<[1], [0], [0], [1], [0, 0, 1, 1], [], []>} : vector<16x32xf32>, vector<32x128xf32>, vector<16x128xf32> -> vector<16x128xf32>
      %c0_16 = arith.constant 0 : index
      %c0_17 = arith.constant 0 : index
      %24 = vector.load %arg6[%c0_16, %c0_17] : memref<1x128xf32, #tpu.memory_space<vmem>>, vector<1x128xf32>
      %25 = vector.broadcast %24 : vector<1x128xf32> to vector<16x128xf32>
      %26 = arith.addf %23, %25 : vector<16x128xf32>
      %27 = arith.negf %26 : vector<16x128xf32>
      %28 = math.exp %27 : vector<16x128xf32>
      %cst_18 = arith.constant 1.000000e+00 : f32
      %29 = vector.broadcast %cst_18 : f32 to vector<16x128xf32>
      %30 = arith.addf %29, %28 : vector<16x128xf32>
      %31 = arith.divf %29, %30 : vector<16x128xf32>
      %c0_19 = arith.constant 0 : index
      %c0_20 = arith.constant 0 : index
      %32 = vector.load %arg7[%c0_19, %c0_20] : memref<16x128xf32, #tpu.memory_space<vmem>>, vector<16x128xf32>
      tpu.vector_store %arg7[%c0_19, %c0_20], %31 {strides = array<i32>} : memref<16x128xf32, #tpu.memory_space<vmem>>, vector<16x128xf32>,
    } else {
    }
    return
  }
  func.func @transform_0(%arg0: i32, %arg1: i32) -> (i32, i32) {
    %c0_i32 = arith.constant 0 : i32
    return %arg0, %arg1 : i32, i32
  }
  func.func @transform_1(%arg0: i32, %arg1: i32) -> (i32, i32) {
    %c0_i32 = arith.constant 0 : i32
    %c0_i32_0 = arith.constant 0 : i32
    %c0_i32_1 = arith.constant 0 : i32
    return %c0_i32, %c0_i32_0 : i32, i32
  }
  func.func @transform_2(%arg0: i32, %arg1: i32) -> (i32, i32) {
    %c0_i32 = arith.constant 0 : i32
    %c0_i32_0 = arith.constant 0 : i32
    %c0_i32_1 = arith.constant 0 : i32
    return %c0_i32, %c0_i32_0 : i32, i32
  }
  func.func @transform_3(%arg0: i32, %arg1: i32) -> (i32, i32) {
    %c0_i32 = arith.constant 0 : i32
    %c0_i32_0 = arith.constant 0 : i32
    %c0_i32_1 = arith.constant 0 : i32
    return %c0_i32, %c0_i32_0 : i32, i32
  }
  func.func @transform_4(%arg0: i32, %arg1: i32) -> (i32, i32) {
    %c0_i32 = arith.constant 0 : i32
    %c0_i32_0 = arith.constant 0 : i32
    %c0_i32_1 = arith.constant 0 : i32
    return %c0_i32, %c0_i32_0 : i32, i32
  }
  func.func @transform_5(%arg0: i32, %arg1: i32) -> (i32, i32) {
    %c0_i32 = arith.constant 0 : i32
    %c0_i32_0 = arith.constant 0 : i32
    return %arg0, %c0_i32 : i32, i32
  }
}

</mosaic_0001>

<llo_original>
// kernel: bow_classifier_forward.1
$region0: #{bow_classifier_forward.1}
  #allocation0 [shape = 'u32[]', space=smem, size = 0x4, offset = 0x4, fixed_abs, tag = 'smem constant byte address 0x4 - core index']
  #allocation1 [shape = 'u32[144,128]{1,0:T(1,128)}', space=vmem, size = 0x12000, scoped, tag = 'internal scratch']
  #allocation2 [shape = 'f32[16,32]{1,0:T(8,128)}', space=vmem, size = 0x2000, scoped, tag = 'scratch operand']
  %s0 = inlined_call_operand.vmem [shape: f32[16,384], index: 0, kind: input, shape index: {}]
  %s1 = inlined_call_operand.vmem [shape: bf16[384,32], index: 1, kind: input, shape index: {}]
  %s2 = inlined_call_operand.vmem [shape: f32[1,32], index: 2, kind: input, shape index: {}]
  %s3 = inlined_call_operand.vmem [shape: f32[32,128], index: 3, kind: input, shape index: {}]
  %s4 = inlined_call_operand.vmem [shape: f32[1,128], index: 4, kind: input, shape index: {}]
  %s5 = inlined_call_operand.vmem [shape: f32[16,128], index: 5, kind: output, shape index: {}]
  %s6 = sld [smem:[#allocation0]]
  $region99: #{bow_classifier_forward.1} parent=0
    _
  %s8 = ssub.s32 1, %s6
  %s9 = scalar_select 0, %s8, %s6
  $region1: #{bow_classifier_forward.1} parent=0
    #allocation3 [shape = 'u8[16384]{0}', space=vmem, size = 0x4000, scoped, tag = 'input window, operand 0']
    loop: start=0, step=1, limit=5
    $region2: #{bow_classifier_forward.1} parent=1 // loop_pre_header
      _
    $region3: #{bow_classifier_forward.1} parent=1 // loop_header
      %s11 = sphi 0, %s15
      %p12 = scmp.ge.s32.totalorder %s11, 5
      %s18 = sphi 0, %s30
      %s19 = sphi 0, %s26
      %s20 = sphi 0, %s18
      %s21 = sphi 0, %s19
      %s22 = sphi 0, %s20
      %s23 = sphi 0, %s21
      %s35 = sphi 0, %s37
      %s38 = sphi 0, %s35
      %s39 = sphi 0, %s38
      %s55 = sphi 0, %s39
      %s59 = sphi 0, %s59
      %s61 = sphi 0, %s59
      %s62 = sphi 0, %s61
      %s76 = sphi 0, %s62
      %s80 = sphi 0, %s80
      %s82 = sphi 0, %s80
      %s83 = sphi 0, %s82
      %s97 = sphi 0, %s83
      %s101 = sphi 0, %s101
      %s103 = sphi 0, %s101
      %s104 = sphi 0, %s103
      %s118 = sphi 0, %s104
      %s122 = sphi 0, %s122
      %s124 = sphi 0, %s122
      %s125 = sphi 0, %s124
      %s139 = sphi 0, %s125
      %s145 = sphi 0, %s147
      %s148 = sphi 0, %s145
      %s149 = sphi 0, %s148
      %s165 = sphi 0, %s149
    $region4: #{bow_classifier_forward.1} parent=1 // loop_header_branch
      %14 = sbr.rel (%p12) target = $region8
    $region5: #{bow_classifier_forward.1} parent=1 // loop_body
      %s16 = ssub.s32 %s11, 1
      %s17 = ssub.s32 %s11, 2
      %s24 = sadd.s32 1, %s19
      %p25 = scmp.ge.s32.totalorder %s24, 3
      %s26 = scalar_select %p25, 0, %s24
      %s27 = sadd.s32 1, %s18
      %s28 = scalar_select %p25, %s27, %s18
      %p29 = scmp.ge.s32.totalorder %s28, 1
      %s30 = scalar_select %p29, 0, %s28
      %s31 = ssub.s32 %s18, %s30
      %s32 = ssub.s32 %s19, %s26
      %s33 = sor.u32 %s31, %s32
      %p34 = scmp.eq.s32.totalorder %s33, 0
      %s36 = sadd.s32 %s35, 1
      %s37 = scalar_select %p34, %s35, %s36
      %p40 = pneg %p34
      %p41 = scmp.eq.s32.totalorder %s11, 2
      %p42 = por %p40, %p41
      %p43 = scmp.ne.s32.totalorder %s35, %s38
      %p44 = scmp.eq.s32.totalorder %s11, 0
      %p45 = por %p43, %p44
      %p46 = scmp.ne.s32.totalorder %s35, %s38
      %p47 = scmp.eq.s32.totalorder %s16, 2
      %p48 = por %p46, %p47
      %p49 = scmp.ne.s32.totalorder %s38, %s39
      %p50 = scmp.eq.s32.totalorder %s16, 0
      %p51 = por %p49, %p50
      %p52 = scmp.ne.s32.totalorder %s38, %s39
      %p53 = scmp.eq.s32.totalorder %s17, 2
      %p54 = por %p52, %p53
      %p56 = scmp.ne.s32.totalorder %s39, %s55
      %p57 = scmp.eq.s32.totalorder %s17, 0
      %p58 = por %p56, %p57
      %s60 = sadd.s32 %s59, 1
      %p63 = scmp.eq.s32.totalorder %s11, 2
      %p64 = scmp.ne.s32.totalorder %s59, %s61
      %p65 = scmp.eq.s32.totalorder %s11, 0
      %p66 = por %p64, %p65
      %p67 = scmp.ne.s32.totalorder %s59, %s61
      %p68 = scmp.eq.s32.totalorder %s16, 2
      %p69 = por %p67, %p68
      %p70 = scmp.ne.s32.totalorder %s61, %s62
      %p71 = scmp.eq.s32.totalorder %s16, 0
      %p72 = por %p70, %p71
      %p73 = scmp.ne.s32.totalorder %s61, %s62
      %p74 = scmp.eq.s32.totalorder %s17, 2
      %p75 = por %p73, %p74
      %p77 = scmp.ne.s32.totalorder %s62, %s76
      %p78 = scmp.eq.s32.totalorder %s17, 0
      %p79 = por %p77, %p78
      %s81 = sadd.s32 %s80, 1
      %p84 = scmp.eq.s32.totalorder %s11, 2
      %p85 = scmp.ne.s32.totalorder %s80, %s82
      %p86 = scmp.eq.s32.totalorder %s11, 0
      %p87 = por %p85, %p86
      %p88 = scmp.ne.s32.totalorder %s80, %s82
      %p89 = scmp.eq.s32.totalorder %s16, 2
      %p90 = por %p88, %p89
      %p91 = scmp.ne.s32.totalorder %s82, %s83
      %p92 = scmp.eq.s32.totalorder %s16, 0
      %p93 = por %p91, %p92
      %p94 = scmp.ne.s32.totalorder %s82, %s83
      %p95 = scmp.eq.s32.totalorder %s17, 2
      %p96 = por %p94, %p95
      %p98 = scmp.ne.s32.totalorder %s83, %s97
      %p99 = scmp.eq.s32.totalorder %s17, 0
      %p100 = por %p98, %p99
      %s102 = sadd.s32 %s101, 1
      %p105 = scmp.eq.s32.totalorder %s11, 2
      %p106 = scmp.ne.s32.totalorder %s101, %s103
      %p107 = scmp.eq.s32.totalorder %s11, 0
      %p108 = por %p106, %p107
      %p109 = scmp.ne.s32.totalorder %s101, %s103
      %p110 = scmp.eq.s32.totalorder %s16, 2
      %p111 = por %p109, %p110
      %p112 = scmp.ne.s32.totalorder %s103, %s104
      %p113 = scmp.eq.s32.totalorder %s16, 0
      %p114 = por %p112, %p113
      %p115 = scmp.ne.s32.totalorder %s103, %s104
      %p116 = scmp.eq.s32.totalorder %s17, 2
      %p117 = por %p115, %p116
      %p119 = scmp.ne.s32.totalorder %s104, %s118
      %p120 = scmp.eq.s32.totalorder %s17, 0
      %p121 = por %p119, %p120
      %s123 = sadd.s32 %s122, 1
      %p126 = scmp.eq.s32.totalorder %s11, 2
      %p127 = scmp.ne.s32.totalorder %s122, %s124
      %p128 = scmp.eq.s32.totalorder %s11, 0
      %p129 = por %p127, %p128
      %p130 = scmp.ne.s32.totalorder %s122, %s124
      %p131 = scmp.eq.s32.totalorder %s16, 2
      %p132 = por %p130, %p131
      %p133 = scmp.ne.s32.totalorder %s124, %s125
      %p134 = scmp.eq.s32.totalorder %s16, 0
      %p135 = por %p133, %p134
      %p136 = scmp.ne.s32.totalorder %s124, %s125
      %p137 = scmp.eq.s32.totalorder %s17, 2
      %p138 = por %p136, %p137
      %p140 = scmp.ne.s32.totalorder %s125, %s139
      %p141 = scmp.eq.s32.totalorder %s17, 0
      %p142 = por %p140, %p141
      %s143 = ssub.s32 %s18, %s30
      %p144 = scmp.eq.s32.totalorder %s143, 0
      %s146 = sadd.s32 %s145, 1
      %s147 = scalar_select %p144, %s145, %s146
      %p150 = pneg %p144
      %p151 = scmp.eq.s32.totalorder %s11, 2
      %p152 = por %p150, %p151
      %p153 = scmp.ne.s32.totalorder %s145, %s148
      %p154 = scmp.eq.s32.totalorder %s11, 0
      %p155 = por %p153, %p154
      %p156 = scmp.ne.s32.totalorder %s145, %s148
      %p157 = scmp.eq.s32.totalorder %s16, 2
      %p158 = por %p156, %p157
      %p159 = scmp.ne.s32.totalorder %s148, %s149
      %p160 = scmp.eq.s32.totalorder %s16, 0
      %p161 = por %p159, %p160
      %p162 = scmp.ne.s32.totalorder %s148, %s149
      %p163 = scmp.eq.s32.totalorder %s17, 2
      %p164 = por %p162, %p163
      %p166 = scmp.ne.s32.totalorder %s149, %s165
      %p167 = scmp.eq.s32.totalorder %s17, 0
      %p168 = por %p166, %p167
      %p169 = scmp.le.s32.totalorder 1, %s11
      %p170 = scmp.lt.s32.totalorder %s11, 4
      %p171 = pnand %p169, %p170
      %p172 = pneg %p171
      // Predicated region
      $region9: #{bow_classifier_forward.1} parent=5 // pred_check
        _
      $region10: #{bow_classifier_forward.1} parent=5 // pred_check_branch
        %174 = sbr.rel (%p171) target = $region12
      $region11: #{bow_classifier_forward.1} parent=5 // pred_region
        %s175 = ssub.s32 %s11, 1
        // Predicated region
        $region13: #{bow_classifier_forward.1} parent=11 // pred_check
          %p176 = pneg %p72
        $region14: #{bow_classifier_forward.1} parent=11 // pred_check_branch
          %178 = sbr.rel (%p176) target = $region16
        $region15: #{bow_classifier_forward.1} parent=11 // pred_region
          _
        $region16: #{bow_classifier_forward.1} parent=11 // pred_fallthru
          _
        // Predicated region
        $region17: #{bow_classifier_forward.1} parent=11 // pred_check
          %p179 = pneg %p93
        $region18: #{bow_classifier_forward.1} parent=11 // pred_check_branch
          %181 = sbr.rel (%p179) target = $region20
        $region19: #{bow_classifier_forward.1} parent=11 // pred_region
          _
        $region20: #{bow_classifier_forward.1} parent=11 // pred_fallthru
          _
        // Predicated region
        $region21: #{bow_classifier_forward.1} parent=11 // pred_check
          %p182 = pneg %p114
        $region22: #{bow_classifier_forward.1} parent=11 // pred_check_branch
          %184 = sbr.rel (%p182) target = $region24
        $region23: #{bow_classifier_forward.1} parent=11 // pred_region
          _
        $region24: #{bow_classifier_forward.1} parent=11 // pred_fallthru
          _
        // Predicated region
        $region25: #{bow_classifier_forward.1} parent=11 // pred_check
          %p185 = pneg %p135
        $region26: #{bow_classifier_forward.1} parent=11 // pred_check_branch
          %187 = sbr.rel (%p185) target = $region28
        $region27: #{bow_classifier_forward.1} parent=11 // pred_region
          _
        $region28: #{bow_classifier_forward.1} parent=11 // pred_fallthru
          _
      $region12: #{bow_classifier_forward.1} parent=5 // pred_fallthru
        _
      %p188 = scmp.lt.s32.totalorder %s11, 3
      // Predicated region
      $region29: #{bow_classifier_forward.1} parent=5 // pred_check
        %p189 = pneg %p188
      $region30: #{bow_classifier_forward.1} parent=5 // pred_check_branch
        %191 = sbr.rel (%p189) target = $region32
      $region31: #{bow_classifier_forward.1} parent=5 // pred_region
        // Predicated region
        $region33: #{bow_classifier_forward.1} parent=31 // pred_check
          %p192 = pneg %p45
        $region34: #{bow_classifier_forward.1} parent=31 // pred_check_branch
          %194 = sbr.rel (%p192) target = $region36
        $region35: #{bow_classifier_forward.1} parent=31 // pred_region
          %s195 = sand.u32 %s35, 1
          %s196 = sand.u32 %s35, 1
          %s197 = smul.addr %s196, 16
          %s198 = scalar_lea.vmem [#allocation3], %s197
          %s199 = smul.u32 2, %s18
          %s200 = smul.addr %s199, 3
          %s201 = sadd.s32 %s19, %s200
          %s202 = smul.addr %s201, 8
          %s203 = scalar_lea.vmem %s0, %s202
          // Predicated region
          $region37: #{bow_classifier_forward.1} parent=35 // pred_check
            _
          $region38: #{bow_classifier_forward.1} parent=35 // pred_check_branch
            %205 = sbr.rel (0) target = $region40
          $region39: #{bow_classifier_forward.1} parent=35 // pred_region
            // Predicated region
            $region41: #{bow_classifier_forward.1} parent=39 // pred_check
              _
            $region42: #{bow_classifier_forward.1} parent=39 // pred_check_branch
              %207 = sbr.rel (0) target = $region44
            $region43: #{bow_classifier_forward.1} parent=39 // pred_region
              // Predicated region
              $region56: #{bow_classifier_forward.1} parent=43 // pred_check
                _
              $region57: #{bow_classifier_forward.1} parent=43 // pred_check_branch
                %224 = sbr.rel (0) target = $region59
              $region58: #{bow_classifier_forward.1} parent=43 // pred_region
                loop: start=0, step=1, limit=1
                $region60: #{bow_classifier_forward.1} parent=58 // loop_pre_header
                  _
                $region61: #{bow_classifier_forward.1} parent=58 // loop_header
                  %s226 = sphi 0, %s230
                  %p227 = scmp.ge.s32.totalorder %s226, 1
                  %s231 = sphi %s203, %s203
                  %s232 = sphi %s198, %s198
                $region62: #{bow_classifier_forward.1} parent=58 // loop_header_branch
                  %229 = sbr.rel (%p227) target = $region66
                $region63: #{bow_classifier_forward.1} parent=58 // loop_body
                  %v233 = vld [vmem:[%s231] sm:$0xff]
                  %234 = vst [vmem:[%s232] sm:$0xff] %v233
                  %v235 = vld [vmem:[%s231 + $0x18] sm:$0xff]
                  %236 = vst [vmem:[%s232 + $0x8] sm:$0xff] %v235
                $region64: #{bow_classifier_forward.1} parent=58 // loop_footer
                  %s230 = sadd.s32 1, %s226
                $region65: #{bow_classifier_forward.1} parent=58 // loop_footer_branch
                  %225 = sbr.rel target = $region61
                $region66: #{bow_classifier_forward.1} parent=58 // loop_exit
                  _
              $region59: #{bow_classifier_forward.1} parent=43 // pred_fallthru
                _
              // Predicated region
              $region67: #{bow_classifier_forward.1} parent=43 // pred_check
                _
              $region68: #{bow_classifier_forward.1} parent=43 // pred_check_branch
                %238 = sbr.rel target = $region70
              $region69: #{bow_classifier_forward.1} parent=43 // pred_region
                _
              $region70: #{bow_classifier_forward.1} parent=43 // pred_fallthru
                _
            $region44: #{bow_classifier_forward.1} parent=39 // pred_fallthru
              _
            // Predicated region
            $region45: #{bow_classifier_forward.1} parent=39 // pred_check
              _
            $region46: #{bow_classifier_forward.1} parent=39 // pred_check_branch
              %209 = sbr.rel target = $region48
            $region47: #{bow_classifier_forward.1} parent=39 // pred_region
              loop: start=0, step=1, limit=1
              $region49: #{bow_classifier_forward.1} parent=47 // loop_pre_header
                _
              $region50: #{bow_classifier_forward.1} parent=47 // loop_header
                %s212 = sphi 0, %s216
                %p213 = scmp.ge.s32.totalorder %s212, 1
                %s217 = sphi %s203, %s203
                %s218 = sphi %s198, %s198
              $region51: #{bow_classifier_forward.1} parent=47 // loop_header_branch
                %215 = sbr.rel (%p213) target = $region55
              $region52: #{bow_classifier_forward.1} parent=47 // loop_body
                %v219 = vld [vmem:[%s217] sm:$0xff]
                %220 = vst [vmem:[%s218] sm:$0xff] %v219
                %v221 = vld [vmem:[%s217 + $0x18] sm:$0xff]
                %222 = vst [vmem:[%s218 + $0x8] sm:$0xff] %v221
              $region53: #{bow_classifier_forward.1} parent=47 // loop_footer
                %s216 = sadd.s32 1, %s212
              $region54: #{bow_classifier_forward.1} parent=47 // loop_footer_branch
                %211 = sbr.rel target = $region50
              $region55: #{bow_classifier_forward.1} parent=47 // loop_exit
                _
            $region48: #{bow_classifier_forward.1} parent=39 // pred_fallthru
              _
          $region40: #{bow_classifier_forward.1} parent=35 // pred_fallthru
            _
          %239 = vnop
        $region36: #{bow_classifier_forward.1} parent=31 // pred_fallthru
          _
      $region32: #{bow_classifier_forward.1} parent=5 // pred_fallthru
        _
      %p240 = scmp.le.s32.totalorder 1, %s11
      %p241 = scmp.lt.s32.totalorder %s11, 4
      %p242 = pnand %p240, %p241
      %p243 = pneg %p242
      // Predicated region
      $region71: #{bow_classifier_forward.1} parent=5 // pred_check
        _
      $region72: #{bow_classifier_forward.1} parent=5 // pred_check_branch
        %245 = sbr.rel (%p242) target = $region74
      $region73: #{bow_classifier_forward.1} parent=5 // pred_region
        %s246 = ssub.s32 %s11, 1
        %s247 = sand.u32 %s38, 1
        %s248 = sand.u32 %s38, 1
        %s249 = smul.addr %s248, 16
        %s250 = scalar_lea.vmem [#allocation3], %s249
        // Predicated region
        $region75: #{bow_classifier_forward.1} parent=73 // pred_check
          %p251 = pneg %p51
        $region76: #{bow_classifier_forward.1} parent=73 // pred_check_branch
          %253 = sbr.rel (%p251) target = $region78
        $region77: #{bow_classifier_forward.1} parent=73 // pred_region
          _
        $region78: #{bow_classifier_forward.1} parent=73 // pred_fallthru
          _
        %s254 = sand.u32 %s38, 1
        %s255 = sand.u32 %s38, 1
        %s256 = smul.addr %s255, 16
        %s257 = scalar_lea.vmem [#allocation3], %s256
        %p258 = pneg %p51
        %p259 = pneg %p48
        %p260 = pneg %p72
        %p261 = pneg %p69
        %p262 = pneg %p93
        %p263 = pneg %p90
        %p264 = pneg %p114
        %p265 = pneg %p111
        %p266 = pneg %p135
        %p267 = pneg %p132
        %p268 = pneg %p161
        %p269 = pneg %p158
        %s270 = smul.u32 2, %s20
        %p271 = scmp.lt.s32.totalorder %s270, 1
        %s272 = scalar_select %p271, %s270, 1
        %s273 = smul.addr %s272, 8
        %s274 = scalar_lea.vmem %s5, %s273
        %s275 = smul.u32 2, %s20
        %s276 = smul.u32 2, %s20
        %p277 = scmp.lt.s32.totalorder %s276, 1
        %s278 = scalar_select %p277, %s276, 1
        %s279 = smul.addr %s278, 8
        %s280 = scalar_lea.vmem %s5, %s279
        %s281 = smul.u32 2, %s20
        %p282 = scmp.eq.s32.totalorder %s21, 0
        // Predicated region
        $region79: #{bow_classifier_forward.1} parent=73 // pred_check
          %p283 = pneg %p282
        $region80: #{bow_classifier_forward.1} parent=73 // pred_check_branch
          %285 = sbr.rel (%p283) target = $region82
        $region81: #{bow_classifier_forward.1} parent=73 // pred_region
          %vm286 = vcmask 261120
          %287 = vst.msk [vmem:[#allocation2] sm:$0xff] %vm286, 0.0
          %288 = vst.msk [vmem:[#allocation2 + $0x8] sm:$0xff] %vm286, 0.0
        $region82: #{bow_classifier_forward.1} parent=73 // pred_fallthru
          _
        %s289 = smul.u32 %s21, 128
        %s290 = sshra.s32 %s289, 3
        %s291 = sand.u32 %s289, 7
        %s292 = smul.addr %s290, 4
        %s293 = scalar_lea.vmem %s1, %s292
        %v294 = vld [vmem:[%s293] sm:$0xf]
        %v295 = vld [vmem:[%s293 + $0x4] sm:$0xf]
        %v296 = vld [vmem:[%s293 + $0x8] sm:$0xf]
        %v297 = vld [vmem:[%s293 + $0xc] sm:$0xf]
        %v298 = vld [vmem:[%s293 + $0x10] sm:$0xf]
        %v299 = vld [vmem:[%s293 + $0x14] sm:$0xf]
        %v300 = vld [vmem:[%s293 + $0x18] sm:$0xf]
        %v301 = vld [vmem:[%s293 + $0x1c] sm:$0xf]
        %v302 = vld [vmem:[%s293 + $0x20] sm:$0xf]
        %v303 = vld [vmem:[%s293 + $0x24] sm:$0xf]
        %v304 = vld [vmem:[%s293 + $0x28] sm:$0xf]
        %v305 = vld [vmem:[%s293 + $0x2c] sm:$0xf]
        %v306 = vld [vmem:[%s293 + $0x30] sm:$0xf]
        %v307 = vld [vmem:[%s293 + $0x34] sm:$0xf]
        %v308 = vld [vmem:[%s293 + $0x38] sm:$0xf]
        %v309 = vld [vmem:[%s293 + $0x3c] sm:$0xf]
        %v310 = vld [vmem:[#allocation2] sm:$0xff]
        %v311 = vld [vmem:[#allocation2 + $0x8] sm:$0xff]
        %v312 = vld [vmem:[%s250] sm:$0xff]
        %v313 = vld [vmem:[%s250 + $0x8] sm:$0xff]
        %v314 = vunpack.c.l.bf16 %v294
        %v315 = vunpack.c.l.bf16 %v295
        %v316 = vunpack.c.l.bf16 %v296
        %v317 = vunpack.c.l.bf16 %v297
        %v318 = vunpack.c.l.bf16 %v298
        %v319 = vunpack.c.l.bf16 %v299
        %v320 = vunpack.c.l.bf16 %v300
        %v321 = vunpack.c.l.bf16 %v301
        %v322 = vunpack.c.l.bf16 %v302
        %v323 = vunpack.c.l.bf16 %v303
        %v324 = vunpack.c.l.bf16 %v304
        %v325 = vunpack.c.l.bf16 %v305
        %v326 = vunpack.c.l.bf16 %v306
        %v327 = vunpack.c.l.bf16 %v307
        %v328 = vunpack.c.l.bf16 %v308
        %v329 = vunpack.c.l.bf16 %v309
        %330 = vmatprep.subr.mxu0 0.0
        %331 = vmatpush1.msra.mxu0 %v314
        %332 = vmatprep.subr.mxu0 0.0
        %333 = vmatpush1.msra.mxu0 %v315
        %334 = vmatprep.subr.mxu0 0.0
        %335 = vmatpush1.msra.mxu0 %v316
        %336 = vmatprep.subr.mxu0 0.0
        %337 = vmatpush1.msra.mxu0 %v317
        %338 = vmatprep.subr.mxu0 0.0
        %339 = vmatpush1.msra.mxu0 %v318
        %340 = vmatprep.subr.mxu0 0.0
        %341 = vmatpush1.msra.mxu0 %v319
        %342 = vmatprep.subr.mxu0 0.0
        %343 = vmatpush1.msra.mxu0 %v320
        %344 = vmatprep.subr.mxu0 0.0
        %345 = vmatpush1.msra.mxu0 %v321
        %346 = vmatprep.subr.mxu0 0.0
        %347 = vmatpush1.msra.mxu0 %v322
        %348 = vmatprep.subr.mxu0 0.0
        %349 = vmatpush1.msra.mxu0 %v323
        %350 = vmatprep.subr.mxu0 0.0
        %351 = vmatpush1.msra.mxu0 %v324
        %352 = vmatprep.subr.mxu0 0.0
        %353 = vmatpush1.msra.mxu0 %v325
        %354 = vmatprep.subr.mxu0 0.0
        %355 = vmatpush1.msra.mxu0 %v326
        %356 = vmatprep.subr.mxu0 0.0
        %357 = vmatpush1.msra.mxu0 %v327
        %358 = vmatprep.subr.mxu0 0.0
        %359 = vmatpush1.msra.mxu0 %v328
        %360 = vmatprep.subr.mxu0 0.0
        %361 = vmatpush1.msra.mxu0 %v329
        %362 = vmatprep.subr.mxu0 0.0
        %363 = vmatpush1.msra.mxu0 0.0
        %364 = vmatprep.subr.mxu0 0.0
        %365 = vmatpush1.msra.mxu0 0.0
        %366 = vmatprep.subr.mxu0 0.0
        %367 = vmatpush1.msra.mxu0 0.0
        %368 = vmatprep.subr.mxu0 0.0
        %369 = vmatpush1.msra.mxu0 0.0
        %370 = vmatprep.subr.mxu0 0.0
        %371 = vmatpush1.msra.mxu0 0.0
        %372 = vmatprep.subr.mxu0 0.0
        %373 = vmatpush1.msra.mxu0 0.0
        %374 = vmatprep.subr.mxu0 0.0
        %375 = vmatpush1.msra.mxu0 0.0
        %376 = vmatprep.subr.mxu0 0.0
        %377 = vmatpush1.msra.mxu0 0.0
        %378 = vmatprep.subr.mxu0 0.0
        %379 = vmatpush1.msra.mxu0 0.0
        %380 = vmatprep.subr.mxu0 0.0
        %381 = vmatpush1.msra.mxu0 0.0
        %382 = vmatprep.subr.mxu0 0.0
        %383 = vmatpush1.msra.mxu0 0.0
        %384 = vmatprep.subr.mxu0 0.0
        %385 = vmatpush1.msra.mxu0 0.0
        %386 = vmatprep.subr.mxu0 0.0
        %387 = vmatpush1.msra.mxu0 0.0
        %388 = vmatprep.subr.mxu0 0.0
        %389 = vmatpush1.msra.mxu0 0.0
        %390 = vmatprep.subr.mxu0 0.0
        %391 = vmatpush1.msra.mxu0 0.0
        %392 = vmatprep.subr.mxu0 0.0
        %393 = vmatpush1.msra.mxu0 0.0
        %394 = vmatprep.mubr.f32.mxu0 0.0
        %395 = vmatmul.mubr.f32.gmra.mrb[0].mxu0 %v312
        %v396 = vpop.f32.mrb[0].mxu0
        %v397 = vadd.f32 0.0, %v396
        %v398 = vpop.f32.mrb[0].mxu0
        %399 = vmatprep.mubr.f32.mxu0 0.0
        %400 = vmatmul.mubr.f32.gmra.mrb[0].mxu0 %v313
        %v401 = vpop.f32.mrb[0].mxu0
        %v402 = vadd.f32 0.0, %v401
        %v403 = vpop.f32.mrb[0].mxu0
        %404 = vdwg.mxu0
        %v405 = vadd.f32 %v310, %v397
        %v406 = vadd.f32 %v311, %v402
        %vm407 = vcmask 261120
        %408 = vst.msk [vmem:[#allocation2] sm:$0xff] %vm407, %v405
        %409 = vst.msk [vmem:[#allocation2 + $0x8] sm:$0xff] %vm407, %v406
        %p410 = scmp.eq.s32.totalorder %s21, 2
        // Predicated region
        $region83: #{bow_classifier_forward.1} parent=73 // pred_check
          %p411 = pneg %p410
        $region84: #{bow_classifier_forward.1} parent=73 // pred_check_branch
          %413 = sbr.rel (%p411) target = $region86
        $region85: #{bow_classifier_forward.1} parent=73 // pred_region
          %v414 = vld [vmem:[#allocation2] sm:$0xff]
          %v415 = vld [vmem:[#allocation2 + $0x8] sm:$0xff]
          %v416 = vld [vmem:[%s2] sm:$0x1]
          %v418 = vlaneseq
          %v419 = vshrl.u32 %v418, 7
          %v420 = vsub.s32 0, %v419
          %v421 = vrot.slane %v416, %v420
          %v423 = vadd.f32 %v414, %v421
          %v424 = vadd.f32 %v415, %v421
          %v425 = vmax.f32 %v423, 0.0
          %v426 = vmax.f32 %v424, 0.0
          %v427 = vld [vmem:[%s3] sm:$0xff]
          %v428 = vld [vmem:[%s3 + $0x8] sm:$0xff]
          %v429 = vld [vmem:[%s3 + $0x10] sm:$0xff]
          %v430 = vld [vmem:[%s3 + $0x18] sm:$0xff]
          %v431 = vld [vmem:[%s4] sm:$0x1]
          %v433 = vlaneseq
          %v434 = vshrl.u32 %v433, 7
          %v435 = vsub.s32 0, %v434
          %v436 = vrot.slane %v431, %v435
          %v439 = vsel %vm407, %v425, 0
          %v442 = vsel %vm407, %v426, 0
          %444 = vmatprep.subr.mxu0 0.0
          %445 = vmatpush1.msra.mxu0 %v427
          %446 = vmatprep.subr.mxu0 0.0
          %447 = vmatpush1.msra.mxu0 %v428
          %448 = vmatprep.subr.mxu0 0.0
          %449 = vmatpush1.msra.mxu0 %v429
          %450 = vmatprep.subr.mxu0 0.0
          %451 = vmatpush1.msra.mxu0 %v430
          %452 = vmatprep.subr.mxu0 0.0
          %453 = vmatpush1.msra.mxu0 0.0
          %454 = vmatprep.subr.mxu0 0.0
          %455 = vmatpush1.msra.mxu0 0.0
          %456 = vmatprep.subr.mxu0 0.0
          %457 = vmatpush1.msra.mxu0 0.0
          %458 = vmatprep.subr.mxu0 0.0
          %459 = vmatpush1.msra.mxu0 0.0
          %460 = vmatprep.subr.mxu0 0.0
          %461 = vmatpush1.msra.mxu0 0.0
          %462 = vmatprep.subr.mxu0 0.0
          %463 = vmatpush1.msra.mxu0 0.0
          %464 = vmatprep.subr.mxu0 0.0
          %465 = vmatpush1.msra.mxu0 0.0
          %466 = vmatprep.subr.mxu0 0.0
          %467 = vmatpush1.msra.mxu0 0.0
          %468 = vmatprep.subr.mxu0 0.0
          %469 = vmatpush1.msra.mxu0 0.0
          %470 = vmatprep.subr.mxu0 0.0
          %471 = vmatpush1.msra.mxu0 0.0
          %472 = vmatprep.subr.mxu0 0.0
          %473 = vmatpush1.msra.mxu0 0.0
          %474 = vmatprep.subr.mxu0 0.0
          %475 = vmatpush1.msra.mxu0 0.0
          %476 = vmatprep.subr.mxu0 0.0
          %477 = vmatpush1.msra.mxu0 0.0
          %478 = vmatprep.subr.mxu0 0.0
          %479 = vmatpush1.msra.mxu0 0.0
          %480 = vmatprep.subr.mxu0 0.0
          %481 = vmatpush1.msra.mxu0 0.0
          %482 = vmatprep.subr.mxu0 0.0
          %483 = vmatpush1.msra.mxu0 0.0
          %484 = vmatprep.subr.mxu0 0.0
          %485 = vmatpush1.msra.mxu0 0.0
          %486 = vmatprep.subr.mxu0 0.0
          %487 = vmatpush1.msra.mxu0 0.0
          %488 = vmatprep.subr.mxu0 0.0
          %489 = vmatpush1.msra.mxu0 0.0
          %490 = vmatprep.subr.mxu0 0.0
          %491 = vmatpush1.msra.mxu0 0.0
          %492 = vmatprep.subr.mxu0 0.0
          %493 = vmatpush1.msra.mxu0 0.0
          %494 = vmatprep.subr.mxu0 0.0
          %495 = vmatpush1.msra.mxu0 0.0
          %496 = vmatprep.subr.mxu0 0.0
          %497 = vmatpush1.msra.mxu0 0.0
          %498 = vmatprep.subr.mxu0 0.0
          %499 = vmatpush1.msra.mxu0 0.0
          %500 = vmatprep.subr.mxu0 0.0
          %501 = vmatpush1.msra.mxu0 0.0
          %502 = vmatprep.subr.mxu0 0.0
          %503 = vmatpush1.msra.mxu0 0.0
          %504 = vmatprep.subr.mxu0 0.0
          %505 = vmatpush1.msra.mxu0 0.0
          %506 = vmatprep.subr.mxu0 0.0
          %507 = vmatpush1.msra.mxu0 0.0
          %508 = vmatprep.mubr.f32.mxu0 0.0
          %509 = vmatmul.mubr.f32.gmra.mrb[0].mxu0 %v439
          %v510 = vpop.f32.mrb[0].mxu0
          %v511 = vadd.f32 %v436, %v510
          %v512 = vpop.f32.mrb[0].mxu0
          %513 = vmatprep.mubr.f32.mxu0 0.0
          %514 = vmatmul.mubr.f32.gmra.mrb[0].mxu0 %v442
          %v515 = vpop.f32.mrb[0].mxu0
          %v516 = vadd.f32 %v436, %v515
          %v517 = vpop.f32.mrb[0].mxu0
          %518 = vdwg.mxu0
          %v519 = vxor.u32 %v511, 2147483648
          %v520 = vxor.u32 %v516, 2147483648
          %v521 = vmul.f32 %v519, 1.442695
          %v522 = vpow.pop %v521
          %v523 = vmul.f32 %v520, 1.442695
          %v524 = vpow.pop %v523
          %v525 = vadd.f32 %v522, 1.0
          %v526 = vadd.f32 %v524, 1.0
          %v527 = vrcp.pop %v525
          %v528 = vmul.f32 1.0, %v527
          %v529 = vrcp.pop %v526
          %v530 = vmul.f32 1.0, %v529
          %531 = vst [vmem:[%s280] sm:$0xff] %v528
          %532 = vst [vmem:[%s280 + $0x8] sm:$0xff] %v530
        $region86: #{bow_classifier_forward.1} parent=73 // pred_fallthru
          _
        %s533 = smul.u32 2, %s20
        %p534 = scmp.lt.s32.totalorder %s533, 1
        %s535 = scalar_select %p534, %s533, 1
        %s536 = smul.addr %s535, 8
        %s537 = scalar_lea.vmem %s5, %s536
        // Predicated region
        $region87: #{bow_classifier_forward.1} parent=73 // pred_check
          %p538 = pneg %p158
        $region88: #{bow_classifier_forward.1} parent=73 // pred_check_branch
          %540 = sbr.rel (%p538) target = $region90
        $region89: #{bow_classifier_forward.1} parent=73 // pred_region
          %s541 = smul.u32 2, %s20
        $region90: #{bow_classifier_forward.1} parent=73 // pred_fallthru
          _
        // Predicated region
        $region91: #{bow_classifier_forward.1} parent=73 // pred_check
          %p542 = pneg %p158
        $region92: #{bow_classifier_forward.1} parent=73 // pred_check_branch
          %544 = sbr.rel (%p542) target = $region94
        $region93: #{bow_classifier_forward.1} parent=73 // pred_region
          %s545 = smul.u32 2, %s20
          %p546 = scmp.lt.s32.totalorder %s545, 1
          %s547 = scalar_select %p546, %s545, 1
          %s548 = smul.addr %s547, 8
          %s549 = scalar_lea.vmem %s5, %s548
        $region94: #{bow_classifier_forward.1} parent=73 // pred_fallthru
          _
      $region74: #{bow_classifier_forward.1} parent=5 // pred_fallthru
        _
      %p550 = scmp.le.s32.totalorder 2, %s11
      // Predicated region
      $region95: #{bow_classifier_forward.1} parent=5 // pred_check
        %p551 = pneg %p550
      $region96: #{bow_classifier_forward.1} parent=5 // pred_check_branch
        %553 = sbr.rel (%p551) target = $region98
      $region97: #{bow_classifier_forward.1} parent=5 // pred_region
        %s554 = ssub.s32 %s11, 2
      $region98: #{bow_classifier_forward.1} parent=5 // pred_fallthru
        _
    $region6: #{bow_classifier_forward.1} parent=1 // loop_footer
      %s15 = sadd.s32 1, %s11
    $region7: #{bow_classifier_forward.1} parent=1 // loop_footer_branch
      %10 = sbr.rel target = $region3
    $region8: #{bow_classifier_forward.1} parent=1 // loop_exit
      _

</llo_original>
